<compile_context>
chip_gen: v7x
topology: tpu7x:2x2x1
jax: 0.10.0
libtpu: 0.0.40
codegen_flags: <defaults>
</compile_context>

<pallas_src>
import math
import functools

import jax
import jax.numpy as jnp
from jax.experimental import pallas as pl
from jax.experimental.pallas import tpu as pltpu


def _attention_kernel(src_ref, pad_ref, w_qkv_ref, out_ref, *,
                      d_k, d_v, mxu_dtype, approx_recip):
    tb, l, d_m = src_ref.shape
    h = 2 * d_k + d_v

    # Activations arrive from HBM in f32 and are cast on the VPU in-kernel
    # (VALU slots have slack; saves a separate wrapper cast pass over HBM).
    s = src_ref[...].astype(mxu_dtype)                    # (TB, L, D_M)
    w = w_qkv_ref[...]                                    # (D_M, H), already mxu_dtype

    # Padding mask is resident as the full (B, L) array; slice this step's rows.
    start = pl.multiple_of(pl.program_id(0) * tb, tb)
    pad = pad_ref[pl.ds(start, tb), :].astype(jnp.float32)   # (TB, L)
    pad_col = pad[:, :, None]                                 # (TB, L, 1)

    # Fused QKV projection: single (TB*L, D_M) @ (D_M, 2*D_K+D_V) MXU matmul.
    qkv = jnp.dot(s.reshape(tb * l, d_m), w,
                  preferred_element_type=jnp.float32).reshape(tb, l, h)

    # 1/sqrt(d_k) is already folded into the W_q columns of the fused weight.
    q = qkv[:, :, :d_k]
    k = qkv[:, :, d_k:2 * d_k]
    v = qkv[:, :, 2 * d_k:]

    # Key (column) padding mask folded into V: diag(mask) commutes through
    # attn @ V because the reference applies the mask *post*-softmax.
    v = v * pad_col

    # Batched Q @ K^T -- transpose absorbed into the MXU contraction (no k.T copy).
    scores = jnp.einsum("bqd,bkd->bqk",
                        q.astype(mxu_dtype), k.astype(mxu_dtype),
                        preferred_element_type=jnp.float32)   # (TB, L, L) f32

    # torch.nn.Softmax(dim=1) on (B, L, L) == softmax over the *query* axis.
    m = jnp.max(scores, axis=1, keepdims=True)
    e = jnp.exp(scores - m)
    denom = jnp.sum(e, axis=1, keepdims=True)
    attn = e * pl.reciprocal(denom, approx=approx_recip)

    out = jnp.einsum("bqk,bkv->bqv",
                     attn.astype(mxu_dtype), v.astype(mxu_dtype),
                     preferred_element_type=jnp.float32)       # (TB, L, D_V)

    # Query (row) padding mask applied to the output (also commutes with attn @ V).
    out = out * pad_col

    # Lane-dense store: out_ref is (TB, 1, L*D_V), so the trailing dim is the
    # full contiguous row instead of a D_V(<128)-wide masked partial store.
    out_ref[...] = out.reshape(tb, 1, l * d_v).astype(out_ref.dtype)


def prepare_qkv_weight(w_q, w_k, w_v, *, mxu_dtype=jnp.bfloat16):
    """Build the fused (D_M, 2*D_K + D_V) projection weight ONCE (cache it).

    1/sqrt(d_k) is folded into W_q (weight-side constant fold), so the kernel
    never scales Q or the quadratic scores tensor.
    """
    d_k = w_q.shape[1]
    w_q_scaled = w_q * (1.0 / math.sqrt(d_k))
    return jnp.concatenate([w_q_scaled, w_k, w_v], axis=1).astype(mxu_dtype)


def _vmem_limit_bytes():
    """Per-generation VMEM budget: ~3/4 of physical capacity, safe fallback."""
    cap = None
    try:
        cap = int(getattr(pltpu.get_tpu_info(), "vmem_capacity_bytes", 0)) or None
    except Exception:
        cap = None
    if cap is None:
        cap = 64 * 1024 * 1024          # conservative (v7x-sized) fallback
    return max(32 * 1024 * 1024, (cap * 3) // 4)


def _pick_block_b(b, l, d_m, d_k, d_v, vmem_limit, mxu_dtype):
    """Largest block_b dividing B such that (a) the grid keeps >= 2 parallel
    steps (both v7x TensorCores get work) and (b) the per-step working set
    (double-buffered blocks + f32 scores/exp intermediates) stays within ~half
    of the VMEM budget."""
    h = 2 * d_k + d_v
    mxu_bytes = jnp.dtype(mxu_dtype).itemsize

    def step_bytes(bb):
        blocks = 2 * (bb * l * d_m * 4 + bb * l * d_v * 4)            # dbl-buffered src/out
        resident = b * l * 4 + d_m * h * mxu_bytes                    # mask + fused weight
        interm = (bb * l * h * 4                                       # qkv (f32)
                  + 3 * bb * l * l * 4                                 # scores / exp / attn (f32)
                  + 2 * bb * l * (l + d_k + d_v) * mxu_bytes)          # MXU-cast operands
        return blocks + resident + interm

    budget = vmem_limit // 2
    cap = max(1, b // 2)
    best = 1
    for bb in range(1, cap + 1):
        if b % bb == 0 and step_bytes(bb) <= budget:
            best = bb
    return best


def attention_pallas(src, padding_mask, w_qkv, d_k, d_v, *,
                     block_b=None, mxu_dtype=jnp.bfloat16):
    b, l, d_m = src.shape
    h = 2 * d_k + d_v
    assert w_qkv.shape == (d_m, h)

    vmem_limit = _vmem_limit_bytes()
    if block_b is None:
        block_b = _pick_block_b(b, l, d_m, d_k, d_v, vmem_limit, mxu_dtype)
    assert b % block_b == 0, "batch must be divisible by block_b"

    pad2 = padding_mask.astype(jnp.float32)          # (B, L), resident in VMEM

    kernel = functools.partial(
        _attention_kernel, d_k=d_k, d_v=d_v, mxu_dtype=mxu_dtype,
        approx_recip=(jnp.dtype(mxu_dtype) != jnp.dtype(jnp.float32)))

    flops = (2 * b * l * d_m * h          # fused QKV projection
             + 2 * b * l * l * d_k        # Q @ K^T
             + 2 * b * l * l * d_v)       # attn @ V
    bytes_accessed = (src.size * src.dtype.itemsize
                      + pad2.size * 4
                      + w_qkv.size * w_qkv.dtype.itemsize
                      + b * l * d_v * src.dtype.itemsize)
    cost = pl.CostEstimate(flops=flops, transcendentals=b * l * l,
                           bytes_accessed=bytes_accessed)

    out = pl.pallas_call(
        kernel,
        out_shape=jax.ShapeDtypeStruct((b, 1, l * d_v), src.dtype),
        grid_spec=pltpu.PrefetchScalarGridSpec(
            num_scalar_prefetch=0,
            grid=(b // block_b,),
            in_specs=[
                pl.BlockSpec((block_b, l, d_m), lambda i: (i, 0, 0)),   # src block (f32)
                pl.BlockSpec((b, l), lambda i: (0, 0)),                 # mask, resident
                pl.BlockSpec((d_m, h), lambda i: (0, 0)),               # fused W, resident
            ],
            out_specs=pl.BlockSpec((block_b, 1, l * d_v), lambda i: (i, 0, 0)),
        ),
        compiler_params=pltpu.CompilerParams(
            dimension_semantics=("parallel",),
            vmem_limit_bytes=vmem_limit,
        ),
        cost_estimate=cost,
    )(src, pad2, w_qkv)

    return out.reshape(b, l, d_v)


def _xavier_uniform(key, fan_in, fan_out):
    bound = math.sqrt(6.0 / (fan_in + fan_out))
    return jax.random.uniform(key, (fan_in, fan_out), jnp.float32, -bound, bound)


def _reference(src, padding_mask, w_q, w_k, w_v, d_k):
    q = jnp.einsum("bld,dk->blk", src, w_q)
    k = jnp.einsum("bld,dk->blk", src, w_k)
    v = jnp.einsum("bld,dv->blv", src, w_v)
    scores = jnp.einsum("bik,bjk->bij", q, k) / math.sqrt(d_k)
    attn = jax.nn.softmax(scores, axis=1)        # torch Softmax(dim=1)
    attn = attn * padding_mask[:, :, None]
    attn = attn * padding_mask[:, None, :]
    return jnp.einsum("bij,bjv->biv", attn, v)


if __name__ == "__main__":
    # Small shapes consistent with the module.
    B, L, D_MODEL, D_K, D_V = 2, 8, 32, 16, 16

    key = jax.random.PRNGKey(0)
    k_src, k_q, k_k, k_v = jax.random.split(key, 4)

    src = jax.random.normal(k_src, (B, L, D_MODEL), jnp.float32)
    w_q = _xavier_uniform(k_q, D_MODEL, D_K)
    w_k = _xavier_uniform(k_k, D_MODEL, D_K)
    w_v = _xavier_uniform(k_v, D_MODEL, D_V)

    # float padding mask: 1 = keep, 0 = pad (last two tokens of batch 1 are padding)
    padding_mask = jnp.ones((B, L), jnp.float32).at[1, L - 2:].set(0.0)

    ref = _reference(src, padding_mask, w_q, w_k, w_v, D_K)

    # bf16 MXU path. Fused weight is prepared once and reused (hoisted/cached);
    # block_b is auto-picked (capped at B//2 so the grid keeps 2 parallel steps).
    w_qkv_bf16 = prepare_qkv_weight(w_q, w_k, w_v, mxu_dtype=jnp.bfloat16)
    out_bf16 = attention_pallas(src, padding_mask, w_qkv_bf16, D_K, D_V,
                                mxu_dtype=jnp.bfloat16)
    out_bf16 = jax.block_until_ready(out_bf16)
    assert out_bf16.shape == (B, L, D_V)
    assert jnp.allclose(out_bf16, ref, atol=3e-2, rtol=3e-2), \
        "bf16 kernel mismatch vs pure-JAX reference"

    # f32 MXU path with exact (non-approx) reciprocal as the tighter numerical
    # check; block_b=1 keeps grid=(2,) so both v7x TensorCores get a step.
    w_qkv_f32 = prepare_qkv_weight(w_q, w_k, w_v, mxu_dtype=jnp.float32)
    out_f32 = attention_pallas(src, padding_mask, w_qkv_f32, D_K, D_V,
                               block_b=1, mxu_dtype=jnp.float32)
    out_f32 = jax.block_until_ready(out_f32)
    assert out_f32.shape == (B, L, D_V)
    assert jnp.allclose(out_f32, ref, atol=1e-2, rtol=1e-2), \
        "f32 kernel mismatch vs pure-JAX reference"

    print("KERNEL_OK")
</pallas_src>

<mosaic_0001>
module attributes {stable_mosaic.version = 11 : i64} {
  func.func @_attention_kernel(%arg0: i32, %arg1: memref<1x8x32xf32, #tpu.memory_space<vmem>>, %arg2: memref<2x8xf32, #tpu.memory_space<vmem>>, %arg3: memref<32x48xbf16, #tpu.memory_space<vmem>>, %arg4: memref<1x1x128xf32, #tpu.memory_space<vmem>>) attributes {dimension_semantics = [#tpu.dimension_semantics<parallel>], iteration_bounds = array<i64: 2>, scalar_prefetch = 0 : i64, scratch_operands = 0 : i64, tpu.core_type = #tpu.core_type<tc>, window_params = [{transform_indices = @transform_0, window_bounds = array<i64: 1, 8, 32>}, {pipeline_mode = #tpu.pipeline_mode<synchronous>, transform_indices = @transform_1, window_bounds = array<i64: 2, 8>}, {pipeline_mode = #tpu.pipeline_mode<synchronous>, transform_indices = @transform_2, window_bounds = array<i64: 32, 48>}, {transform_indices = @transform_3, window_bounds = array<i64: 1, 1, 128>}]} {
    %c0 = arith.constant 0 : index
    %c0_0 = arith.constant 0 : index
    %c0_1 = arith.constant 0 : index
    %0 = vector.load %arg1[%c0, %c0_0, %c0_1] : memref<1x8x32xf32, #tpu.memory_space<vmem>>, vector<1x8x32xf32>
    %1 = arith.truncf %0 : vector<1x8x32xf32> to vector<1x8x32xbf16>
    %c0_2 = arith.constant 0 : index
    %c0_3 = arith.constant 0 : index
    %2 = vector.load %arg3[%c0_2, %c0_3] : memref<32x48xbf16, #tpu.memory_space<vmem>>, vector<32x48xbf16>
    %c1_i32 = arith.constant 1 : i32
    %3 = arith.muli %arg0, %c1_i32 : i32
    %4 = tpu.assume_multiple %3, 1 : i32
    %5 = arith.index_cast %4 : i32 to index
    %c0_4 = arith.constant 0 : index
    %6 = vector.load %arg2[%5, %c0_4] : memref<2x8xf32, #tpu.memory_space<vmem>>, vector<1x8xf32>
    %7 = vector.shape_cast %6 : vector<1x8xf32> to vector<1x8x1xf32>
    %8 = vector.shape_cast %1 : vector<1x8x32xbf16> to vector<8x32xbf16>
    %cst = arith.constant dense<0.000000e+00> : vector<8x48xf32>
    %9 = tpu.matmul %8, %2, %cst {dimension_numbers = #tpu.dot_dimension_numbers<[1], [0], [0], [1], [0, 0, 1, 1], [], []>} : vector<8x32xbf16>, vector<32x48xbf16>, vector<8x48xf32> -> vector<8x48xf32>
    %10 = vector.shape_cast %9 : vector<8x48xf32> to vector<1x8x48xf32>
    %11 = vector.extract_strided_slice %10 {offsets = [0, 0, 0], sizes = [1, 8, 16], strides = [1, 1, 1]} : vector<1x8x48xf32> to vector<1x8x16xf32>
    %12 = vector.extract_strided_slice %10 {offsets = [0, 0, 16], sizes = [1, 8, 16], strides = [1, 1, 1]} : vector<1x8x48xf32> to vector<1x8x16xf32>
    %13 = vector.extract_strided_slice %10 {offsets = [0, 0, 32], sizes = [1, 8, 16], strides = [1, 1, 1]} : vector<1x8x48xf32> to vector<1x8x16xf32>
    %14 = vector.broadcast %7 : vector<1x8x1xf32> to vector<1x8x16xf32>
    %15 = arith.mulf %13, %14 : vector<1x8x16xf32>
    %16 = arith.truncf %11 : vector<1x8x16xf32> to vector<1x8x16xbf16>
    %17 = arith.truncf %12 : vector<1x8x16xf32> to vector<1x8x16xbf16>
    "tpu.trace_start"() <{level = 10 : i32, message = "bqd,bkd->bqk"}> : () -> ()
    %cst_5 = arith.constant dense<0.000000e+00> : vector<1x8x8xf32>
    %18 = tpu.matmul %16, %17, %cst_5 {dimension_numbers = #tpu.dot_dimension_numbers<[2], [2], [1], [1], [0, 0, 0, 1, 1, 1], [0], [0]>} : vector<1x8x16xbf16>, vector<1x8x16xbf16>, vector<1x8x8xf32> -> vector<1x8x8xf32>
    "tpu.trace_stop"() : () -> ()
    %cst_6 = arith.constant dense<0xFF800000> : vector<1x8xf32>
    %19 = vector.multi_reduction <maximumf>, %18, %cst_6 [1] : vector<1x8x8xf32> to vector<1x8xf32>
    %20 = vector.shape_cast %19 : vector<1x8xf32> to vector<1x1x8xf32>
    %21 = vector.broadcast %20 : vector<1x1x8xf32> to vector<1x8x8xf32>
    %22 = arith.subf %18, %21 : vector<1x8x8xf32>
    %23 = math.exp %22 : vector<1x8x8xf32>
    %cst_7 = arith.constant dense<0.000000e+00> : vector<1x8xf32>
    %24 = vector.multi_reduction <add>, %23, %cst_7 [1] : vector<1x8x8xf32> to vector<1x8xf32>
    %25 = vector.shape_cast %24 : vector<1x8xf32> to vector<1x1x8xf32>
    %26 = tpu.reciprocal %25 {approx = true} : vector<1x1x8xf32> -> vector<1x1x8xf32>
    %27 = vector.broadcast %26 : vector<1x1x8xf32> to vector<1x8x8xf32>
    %28 = arith.mulf %23, %27 : vector<1x8x8xf32>
    %29 = arith.truncf %28 : vector<1x8x8xf32> to vector<1x8x8xbf16>
    %30 = arith.truncf %15 : vector<1x8x16xf32> to vector<1x8x16xbf16>
    "tpu.trace_start"() <{level = 10 : i32, message = "bqk,bkv->bqv"}> : () -> ()
    %cst_8 = arith.constant dense<0.000000e+00> : vector<1x8x16xf32>
    %31 = tpu.matmul %29, %30, %cst_8 {dimension_numbers = #tpu.dot_dimension_numbers<[2], [1], [1], [2], [0, 0, 0, 1, 1, 2], [0], [0]>} : vector<1x8x8xbf16>, vector<1x8x16xbf16>, vector<1x8x16xf32> -> vector<1x8x16xf32>
    "tpu.trace_stop"() : () -> ()
    %32 = vector.broadcast %7 : vector<1x8x1xf32> to vector<1x8x16xf32>
    %33 = arith.mulf %31, %32 : vector<1x8x16xf32>
    %34 = vector.shape_cast %33 : vector<1x8x16xf32> to vector<1x1x128xf32>
    %c0_9 = arith.constant 0 : index
    %c0_10 = arith.constant 0 : index
    %c0_11 = arith.constant 0 : index
    %35 = vector.load %arg4[%c0_9, %c0_10, %c0_11] : memref<1x1x128xf32, #tpu.memory_space<vmem>>, vector<1x1x128xf32>
    tpu.vector_store %arg4[%c0_9, %c0_10, %c0_11], %34 {strides = array<i32>} : memref<1x1x128xf32, #tpu.memory_space<vmem>>, vector<1x1x128xf32>,
    return
  }
  func.func @transform_0(%arg0: i32) -> (i32, i32, i32) {
    %c0_i32 = arith.constant 0 : i32
    %c0_i32_0 = arith.constant 0 : i32
    %c0_i32_1 = arith.constant 0 : i32
    return %arg0, %c0_i32, %c0_i32_0 : i32, i32, i32
  }
  func.func @transform_1(%arg0: i32) -> (i32, i32) {
    %c0_i32 = arith.constant 0 : i32
    %c0_i32_0 = arith.constant 0 : i32
    %c0_i32_1 = arith.constant 0 : i32
    return %c0_i32, %c0_i32_0 : i32, i32
  }
  func.func @transform_2(%arg0: i32) -> (i32, i32) {
    %c0_i32 = arith.constant 0 : i32
    %c0_i32_0 = arith.constant 0 : i32
    %c0_i32_1 = arith.constant 0 : i32
    return %c0_i32, %c0_i32_0 : i32, i32
  }
  func.func @transform_3(%arg0: i32) -> (i32, i32, i32) {
    %c0_i32 = arith.constant 0 : i32
    %c0_i32_0 = arith.constant 0 : i32
    %c0_i32_1 = arith.constant 0 : i32
    return %arg0, %c0_i32, %c0_i32_0 : i32, i32, i32
  }
}

</mosaic_0001>

<llo_original>
// kernel: tpu_custom_call.1
$region0: #{tpu_custom_call.1}
  #allocation0 [shape = 'u32[]', space=smem, size = 0x4, offset = 0x4, fixed_abs, tag = 'smem constant byte address 0x4 - core index']
  #allocation1 [shape = 'u32[144,128]{1,0:T(1,128)}', space=vmem, size = 0x12000, scoped, tag = 'internal scratch']
  %s0 = inlined_call_operand.hbm [shape: f32[2,8,32], index: 0, kind: input, shape index: {}]
  %s1 = inlined_call_operand.vmem [shape: f32[2,8], index: 1, kind: input, shape index: {}]
  %s2 = inlined_call_operand.hbm [shape: bf16[32,48], index: 2, kind: input, shape index: {}]
  %s3 = inlined_call_operand.hbm [shape: f32[2,1,128], index: 3, kind: output, shape index: {}]
  %s4 = sld [smem:[#allocation0]]
  $region53: #{tpu_custom_call.1} parent=0
    _
  %s6 = ssub.s32 1, %s4
  %s7 = scalar_select 0, %s6, %s4
  $region1: #{tpu_custom_call.1} parent=0
    #allocation2 [shape = 'u8[8192]{0}', space=vmem, size = 0x2000, scoped, tag = 'input window, operand 0']
    #allocation3 [shape = 's32[2]{0}', space=sflag, size = 0x8, scoped, tag = 'scoped memory for tpu_custom_call.1']
    #allocation4 [shape = 's32[2]{0}', space=sflag, size = 0x8, scoped, tag = 'scoped memory for tpu_custom_call.1']
    #allocation5 [shape = 'u8[8192]{0}', space=vmem, size = 0x2000, scoped, tag = 'input window, operand 2, single buffered']
    #allocation6 [shape = 's32[1]{0}', space=sflag, size = 0x4, scoped, tag = 'scoped memory for tpu_custom_call.1']
    #allocation7 [shape = 'u8[1024]{0}', space=vmem, size = 0x400, scoped, tag = 'output window, operand 0']
    %8 = vsyncpa [#allocation3], 0
    %s9 = scalar_lea.sflag [#allocation3], 1
    %10 = vsyncpa %s9, 0
    %11 = vsyncpa [#allocation6], 0
    %12 = vsyncpa [#allocation4], 0
    %s13 = scalar_lea.sflag [#allocation4], 1
    %14 = vsyncpa %s13, 0
    loop: start=0, step=1, limit=4
    $region2: #{tpu_custom_call.1} parent=1 // loop_pre_header
      _
    $region3: #{tpu_custom_call.1} parent=1 // loop_header
      %s16 = sphi 0, %s20
      %p17 = scmp.ge.s32.totalorder %s16, 4
      %s26 = sphi 0, %s28
      %s29 = sphi 0, %s26
      %s30 = sphi 0, %s29
      %s46 = sphi 0, %s30
      %s50 = sphi 0, %s50
      %s52 = sphi 0, %s50
      %s53 = sphi 0, %s52
      %s67 = sphi 0, %s53
      %s71 = sphi 0, %s71
      %s73 = sphi 0, %s71
      %s74 = sphi 0, %s73
      %s88 = sphi 0, %s74
      %s94 = sphi 0, %s96
      %s97 = sphi 0, %s94
      %s98 = sphi 0, %s97
      %s114 = sphi 0, %s98
    $region4: #{tpu_custom_call.1} parent=1 // loop_header_branch
      %19 = sbr.rel (%p17) target = $region8
    $region5: #{tpu_custom_call.1} parent=1 // loop_body
      %s21 = ssub.s32 %s16, 1
      %s22 = ssub.s32 %s16, 2
      %s23 = sadd.s32 %s16, 1
      %s24 = ssub.s32 %s16, %s23
      %p25 = scmp.eq.s32.totalorder %s24, 0
      %s27 = sadd.s32 %s26, 1
      %s28 = scalar_select %p25, %s26, %s27
      %p31 = pneg %p25
      %p32 = scmp.eq.s32.totalorder %s16, 1
      %p33 = por %p31, %p32
      %p34 = scmp.ne.s32.totalorder %s26, %s29
      %p35 = scmp.eq.s32.totalorder %s16, 0
      %p36 = por %p34, %p35
      %p37 = scmp.ne.s32.totalorder %s26, %s29
      %p38 = scmp.eq.s32.totalorder %s21, 1
      %p39 = por %p37, %p38
      %p40 = scmp.ne.s32.totalorder %s29, %s30
      %p41 = scmp.eq.s32.totalorder %s21, 0
      %p42 = por %p40, %p41
      %p43 = scmp.ne.s32.totalorder %s29, %s30
      %p44 = scmp.eq.s32.totalorder %s22, 1
      %p45 = por %p43, %p44
      %p47 = scmp.ne.s32.totalorder %s30, %s46
      %p48 = scmp.eq.s32.totalorder %s22, 0
      %p49 = por %p47, %p48
      %s51 = sadd.s32 %s50, 1
      %p54 = scmp.eq.s32.totalorder %s16, 1
      %p55 = scmp.ne.s32.totalorder %s50, %s52
      %p56 = scmp.eq.s32.totalorder %s16, 0
      %p57 = por %p55, %p56
      %p58 = scmp.ne.s32.totalorder %s50, %s52
      %p59 = scmp.eq.s32.totalorder %s21, 1
      %p60 = por %p58, %p59
      %p61 = scmp.ne.s32.totalorder %s52, %s53
      %p62 = scmp.eq.s32.totalorder %s21, 0
      %p63 = por %p61, %p62
      %p64 = scmp.ne.s32.totalorder %s52, %s53
      %p65 = scmp.eq.s32.totalorder %s22, 1
      %p66 = por %p64, %p65
      %p68 = scmp.ne.s32.totalorder %s53, %s67
      %p69 = scmp.eq.s32.totalorder %s22, 0
      %p70 = por %p68, %p69
      %s72 = sadd.s32 %s71, 1
      %p75 = scmp.eq.s32.totalorder %s16, 1
      %p76 = scmp.ne.s32.totalorder %s71, %s73
      %p77 = scmp.eq.s32.totalorder %s16, 0
      %p78 = por %p76, %p77
      %p79 = scmp.ne.s32.totalorder %s71, %s73
      %p80 = scmp.eq.s32.totalorder %s21, 1
      %p81 = por %p79, %p80
      %p82 = scmp.ne.s32.totalorder %s73, %s74
      %p83 = scmp.eq.s32.totalorder %s21, 0
      %p84 = por %p82, %p83
      %p85 = scmp.ne.s32.totalorder %s73, %s74
      %p86 = scmp.eq.s32.totalorder %s22, 1
      %p87 = por %p85, %p86
      %p89 = scmp.ne.s32.totalorder %s74, %s88
      %p90 = scmp.eq.s32.totalorder %s22, 0
      %p91 = por %p89, %p90
      %s92 = ssub.s32 %s16, %s23
      %p93 = scmp.eq.s32.totalorder %s92, 0
      %s95 = sadd.s32 %s94, 1
      %s96 = scalar_select %p93, %s94, %s95
      %p99 = pneg %p93
      %p100 = scmp.eq.s32.totalorder %s16, 1
      %p101 = por %p99, %p100
      %p102 = scmp.ne.s32.totalorder %s94, %s97
      %p103 = scmp.eq.s32.totalorder %s16, 0
      %p104 = por %p102, %p103
      %p105 = scmp.ne.s32.totalorder %s94, %s97
      %p106 = scmp.eq.s32.totalorder %s21, 1
      %p107 = por %p105, %p106
      %p108 = scmp.ne.s32.totalorder %s97, %s98
      %p109 = scmp.eq.s32.totalorder %s21, 0
      %p110 = por %p108, %p109
      %p111 = scmp.ne.s32.totalorder %s97, %s98
      %p112 = scmp.eq.s32.totalorder %s22, 1
      %p113 = por %p111, %p112
      %p115 = scmp.ne.s32.totalorder %s98, %s114
      %p116 = scmp.eq.s32.totalorder %s22, 0
      %p117 = por %p115, %p116
      %p118 = scmp.le.s32.totalorder 1, %s16
      %p119 = scmp.lt.s32.totalorder %s16, 3
      %p120 = pnand %p118, %p119
      %p121 = pneg %p120
      // Predicated region
      $region9: #{tpu_custom_call.1} parent=5 // pred_check
        _
      $region10: #{tpu_custom_call.1} parent=5 // pred_check_branch
        %123 = sbr.rel (%p120) target = $region12
      $region11: #{tpu_custom_call.1} parent=5 // pred_region
        %s124 = ssub.s32 %s16, 1
        // Predicated region
        $region13: #{tpu_custom_call.1} parent=11 // pred_check
          %p125 = pneg %p63
        $region14: #{tpu_custom_call.1} parent=11 // pred_check_branch
          %127 = sbr.rel (%p125) target = $region16
        $region15: #{tpu_custom_call.1} parent=11 // pred_region
          _
        $region16: #{tpu_custom_call.1} parent=11 // pred_fallthru
          _
        // Predicated region
        $region17: #{tpu_custom_call.1} parent=11 // pred_check
          %p128 = pneg %p84
        $region18: #{tpu_custom_call.1} parent=11 // pred_check_branch
          %130 = sbr.rel (%p128) target = $region20
        $region19: #{tpu_custom_call.1} parent=11 // pred_region
          %s132 = ssub.s32 256, 256
          %133 = vsyncadd [#allocation6], %s132
          %s134 = sshll.u32 [#allocation5], 4
          %s135 = int_to_ptr.vmem [resolvable:$true] %s134
          %140 = dma.hbm_to_vmem [thread:$0]  %s2, 256, %s135, [#allocation6], 64, 64, 4
        $region20: #{tpu_custom_call.1} parent=11 // pred_fallthru
          _
      $region12: #{tpu_custom_call.1} parent=5 // pred_fallthru
        _
      %p141 = scmp.lt.s32.totalorder %s16, 2
      // Predicated region
      $region21: #{tpu_custom_call.1} parent=5 // pred_check
        %p142 = pneg %p141
      $region22: #{tpu_custom_call.1} parent=5 // pred_check_branch
        %144 = sbr.rel (%p142) target = $region24
      $region23: #{tpu_custom_call.1} parent=5 // pred_region
        // Predicated region
        $region25: #{tpu_custom_call.1} parent=23 // pred_check
          %p145 = pneg %p36
        $region26: #{tpu_custom_call.1} parent=23 // pred_check_branch
          %147 = sbr.rel (%p145) target = $region28
        $region27: #{tpu_custom_call.1} parent=23 // pred_region
          %s148 = sand.u32 %s26, 1
          %s149 = scalar_lea.sflag [#allocation3], %s148
          %s150 = sand.u32 %s26, 1
          %s151 = smul.addr %s150, 8
          %s152 = scalar_lea.vmem [#allocation2], %s151
          %s154 = ssub.s32 128, 128
          %155 = vsyncadd %s149, %s154
          %s156 = smul.addr %s16, 128
          %s157 = scalar_lea.hbm %s0, %s156
          %s159 = sshll.u32 %s152, 4
          %s160 = int_to_ptr.vmem [resolvable:$true] %s159
          %162 = dma.hbm_to_vmem [thread:$0]  %s157, 128, %s160, %s149
        $region28: #{tpu_custom_call.1} parent=23 // pred_fallthru
          _
      $region24: #{tpu_custom_call.1} parent=5 // pred_fallthru
        _
      %p163 = scmp.le.s32.totalorder 1, %s16
      %p164 = scmp.lt.s32.totalorder %s16, 3
      %p165 = pnand %p163, %p164
      %p166 = pneg %p165
      // Predicated region
      $region29: #{tpu_custom_call.1} parent=5 // pred_check
        _
      $region30: #{tpu_custom_call.1} parent=5 // pred_check_branch
        %168 = sbr.rel (%p165) target = $region32
      $region31: #{tpu_custom_call.1} parent=5 // pred_region
        %s169 = ssub.s32 %s16, 1
        %s170 = sand.u32 %s29, 1
        %s171 = scalar_lea.sflag [#allocation3], %s170
        %s172 = sand.u32 %s29, 1
        %s173 = smul.addr %s172, 8
        %s174 = scalar_lea.vmem [#allocation2], %s173
        // Predicated region
        $region33: #{tpu_custom_call.1} parent=31 // pred_check
          %p175 = pneg %p42
        $region34: #{tpu_custom_call.1} parent=31 // pred_check_branch
          %177 = sbr.rel (%p175) target = $region36
        $region35: #{tpu_custom_call.1} parent=31 // pred_region
          %178 = dma.done %s171, 128
        $region36: #{tpu_custom_call.1} parent=31 // pred_fallthru
          _
        // Predicated region
        $region37: #{tpu_custom_call.1} parent=31 // pred_check
          %p179 = pneg %p84
        $region38: #{tpu_custom_call.1} parent=31 // pred_check_branch
          %181 = sbr.rel (%p179) target = $region40
        $region39: #{tpu_custom_call.1} parent=31 // pred_region
          %182 = dma.done [#allocation6], 256
        $region40: #{tpu_custom_call.1} parent=31 // pred_fallthru
          _
        %s183 = sand.u32 %s29, 1
        %s184 = scalar_lea.sflag [#allocation3], %s183
        %s185 = sand.u32 %s29, 1
        %s186 = smul.addr %s185, 8
        %s187 = scalar_lea.vmem [#allocation2], %s186
        %p188 = pneg %p42
        %p189 = pneg %p39
        %p190 = pneg %p63
        %p191 = pneg %p60
        %p192 = pneg %p84
        %p193 = pneg %p81
        %p194 = pneg %p110
        %p195 = pneg %p107
        %s196 = sand.u32 %s97, 1
        %s197 = scalar_lea.sflag [#allocation4], %s196
        %s198 = sand.u32 %s97, 1
        %s199 = scalar_lea.vmem [#allocation7], %s198
        %v201 = vld [vmem:[%s174] sm:$0xff]
        %v202 = vpack.c.bf16 %v201, %v201
        %v203 = vld [vmem:[#allocation5] sm:$0xf]
        %v204 = vld [vmem:[#allocation5 + $0x4] sm:$0xf]
        %v205 = vld [vmem:[#allocation5 + $0x8] sm:$0xf]
        %v206 = vld [vmem:[#allocation5 + $0xc] sm:$0xf]
        %s207 = scalar_lea.vmem %s1, %s21
        %v208 = vld [vmem:[%s207] sm:$0x1]
        %v209 = vlaneseq
        %v210 = vshrl.u32 %v209, 7
        %v211 = vsub.s32 0, %v210
        %v212 = vrot.slane %v208, %v211
        %214 = vbcast.lane.b32.xlu0 %v212, 256
        %v215 = vpop.permute.xlu0 %214
        %v220 = vunpack.c.l.b16 %v203
        %v221 = vunpack.c.l.b16 %v204
        %v222 = vunpack.c.l.b16 %v205
        %v223 = vunpack.c.l.b16 %v206
        %v224 = vpack.c.b16 %v221, %v220
        %v225 = vpack.c.b16 %v223, %v222
        %vm228 = vcmask 261120
        %v230 = vsel %vm228, %v202, 0
        %232 = vmatprep.subr.bf16.mxu0 0
        %233 = vmatpush1.bf16.msra.mxu0 %v224
        %234 = vmatprep.subr.bf16.mxu0 0
        %235 = vmatpush1.bf16.msra.mxu0 %v225
        %236 = vmatprep.subr.bf16.mxu0 0
        %237 = vmatpush1.bf16.msra.mxu0 0
        %238 = vmatprep.subr.bf16.mxu0 0
        %239 = vmatpush1.bf16.msra.mxu0 0
        %240 = vmatprep.subr.bf16.mxu0 0
        %241 = vmatpush1.bf16.msra.mxu0 0
        %242 = vmatprep.subr.bf16.mxu0 0
        %243 = vmatpush1.bf16.msra.mxu0 0
        %244 = vmatprep.subr.bf16.mxu0 0
        %245 = vmatpush1.bf16.msra.mxu0 0
        %246 = vmatprep.subr.bf16.mxu0 0
        %247 = vmatpush1.bf16.msra.mxu0 0
        %248 = vmatprep.subr.bf16.mxu0 0
        %249 = vmatpush1.bf16.msra.mxu0 0
        %250 = vmatprep.subr.bf16.mxu0 0
        %251 = vmatpush1.bf16.msra.mxu0 0
        %252 = vmatprep.subr.bf16.mxu0 0
        %253 = vmatpush1.bf16.msra.mxu0 0
        %254 = vmatprep.subr.bf16.mxu0 0
        %255 = vmatpush1.bf16.msra.mxu0 0
        %256 = vmatprep.subr.bf16.mxu0 0
        %257 = vmatpush1.bf16.msra.mxu0 0
        %258 = vmatprep.subr.bf16.mxu0 0
        %259 = vmatpush1.bf16.msra.mxu0 0
        %260 = vmatprep.subr.bf16.mxu0 0
        %261 = vmatpush1.bf16.msra.mxu0 0
        %262 = vmatprep.subr.bf16.mxu0 0
        %263 = vmatpush1.bf16.msra.mxu0 0
        %264 = vmatprep.mubr.bf16.mxu0 0
        %265 = vmatmul.mubr.bf16.gmra.mrb[0].mxu0 %v230
        %v266 = vpop.f32.mrb[0].mxu0
        %v267 = vadd.f32 0.0, %v266
        %v268 = vpop.f32.mrb[0].mxu0
        %v269 = vpop.f32.mrb[0].mxu0
        %v270 = vpop.f32.mrb[0].mxu0
        %271 = vdwg.mxu0
        %v272 = vmul.f32 %v267, %v215
        %v273 = vpack.c.bf16 %v267, %v267
        %275 = vrot.lane.b32.xlu0 %v273, 112
        %v276 = vpop.permute.xlu0 %275
        %vm277 = vcmask 130048
        %v279 = vsel %vm277, %v273, 0
        %v282 = vsel %vm277, %v276, 0
        %284 = vmatprep.subr.bf16.mxu0 0
        %285 = vmatpush1.bf16.xpose.msra.mxu0 %v282
        %286 = vmatprep.subr.bf16.mxu0 0
        %287 = vmatpush1.bf16.xpose.msra.mxu0 0
        %288 = vmatprep.subr.bf16.mxu0 0
        %289 = vmatpush1.bf16.xpose.msra.mxu0 0
        %290 = vmatprep.subr.bf16.mxu0 0
        %291 = vmatpush1.bf16.xpose.msra.mxu0 0
        %292 = vmatprep.subr.bf16.mxu0 0
        %293 = vmatpush1.bf16.xpose.msra.mxu0 0
        %294 = vmatprep.subr.bf16.mxu0 0
        %295 = vmatpush1.bf16.xpose.msra.mxu0 0
        %296 = vmatprep.subr.bf16.mxu0 0
        %297 = vmatpush1.bf16.xpose.msra.mxu0 0
        %298 = vmatprep.subr.bf16.mxu0 0
        %299 = vmatpush1.bf16.xpose.msra.mxu0 0
        %300 = vmatprep.subr.bf16.mxu0 0
        %301 = vmatpush1.bf16.xpose.msra.mxu0 0
        %302 = vmatprep.subr.bf16.mxu0 0
        %303 = vmatpush1.bf16.xpose.msra.mxu0 0
        %304 = vmatprep.subr.bf16.mxu0 0
        %305 = vmatpush1.bf16.xpose.msra.mxu0 0
        %306 = vmatprep.subr.bf16.mxu0 0
        %307 = vmatpush1.bf16.xpose.msra.mxu0 0
        %308 = vmatprep.subr.bf16.mxu0 0
        %309 = vmatpush1.bf16.xpose.msra.mxu0 0
        %310 = vmatprep.subr.bf16.mxu0 0
        %311 = vmatpush1.bf16.xpose.msra.mxu0 0
        %312 = vmatprep.subr.bf16.mxu0 0
        %313 = vmatpush1.bf16.xpose.msra.mxu0 0
        %314 = vmatprep.subr.bf16.mxu0 0
        %315 = vmatpush1.bf16.xpose.msra.mxu0 0
        %316 = vmatprep.mubr.bf16.mxu0 0
        %317 = vmatmul.mubr.bf16.gmra.mrb[0].mxu0 %v279
        %v318 = vpop.f32.mrb[0].mxu0
        %v319 = vadd.f32 0.0, %v318
        %v320 = vpop.f32.mrb[0].mxu0
        %v321 = vpop.f32.mrb[0].mxu0
        %v322 = vpop.f32.mrb[0].mxu0
        %323 = vdwg.mxu0
        %vm324 = vcmask 64512
        %v325 = vsel %vm324, %v319, -inf
        %v326 = vrot.slane %v325, 4
        %v327 = vmax.f32 %v325, %v326
        %v328 = vrot.slane %v327, 2
        %v329 = vmax.f32 %v327, %v328
        %v330 = vrot.slane %v329, 1
        %v331 = vmax.f32 %v329, %v330
        %v332 = vsub.f32 %v319, %v331
        %v333 = vmul.f32 %v332, 1.442695
        %v334 = vpow.pop %v333
        %v335 = vsel %vm324, %v334, 0.0
        %v336 = vrot.slane %v335, 4
        %v337 = vadd.f32 %v335, %v336
        %v338 = vrot.slane %v337, 2
        %v339 = vadd.f32 %v337, %v338
        %v340 = vrot.slane %v339, 1
        %v341 = vadd.f32 %v339, %v340
        %v342 = vrcp.pop %v341
        %v343 = vmul.f32 %v334, %v342
        %v344 = vpack.c.bf16 %v343, %v343
        %v345 = vpack.c.bf16 %v272, %v272
        %347 = vrot.lane.b32.xlu0 %v345, 96
        %v348 = vpop.permute.xlu0 %347
        %v350 = vsel %vm324, %v344, 0
        %vm352 = vcmask 1043456
        %v354 = vsel %vm352, %v348, 0
        %356 = vmatprep.subr.bf16.mxu0 0
        %357 = vmatpush1.bf16.msra.mxu0 %v354
        %358 = vmatprep.subr.bf16.mxu0 0
        %359 = vmatpush1.bf16.msra.mxu0 0
        %360 = vmatprep.subr.bf16.mxu0 0
        %361 = vmatpush1.bf16.msra.mxu0 0
        %362 = vmatprep.subr.bf16.mxu0 0
        %363 = vmatpush1.bf16.msra.mxu0 0
        %364 = vmatprep.subr.bf16.mxu0 0
        %365 = vmatpush1.bf16.msra.mxu0 0
        %366 = vmatprep.subr.bf16.mxu0 0
        %367 = vmatpush1.bf16.msra.mxu0 0
        %368 = vmatprep.subr.bf16.mxu0 0
        %369 = vmatpush1.bf16.msra.mxu0 0
        %370 = vmatprep.subr.bf16.mxu0 0
        %371 = vmatpush1.bf16.msra.mxu0 0
        %372 = vmatprep.subr.bf16.mxu0 0
        %373 = vmatpush1.bf16.msra.mxu0 0
        %374 = vmatprep.subr.bf16.mxu0 0
        %375 = vmatpush1.bf16.msra.mxu0 0
        %376 = vmatprep.subr.bf16.mxu0 0
        %377 = vmatpush1.bf16.msra.mxu0 0
        %378 = vmatprep.subr.bf16.mxu0 0
        %379 = vmatpush1.bf16.msra.mxu0 0
        %380 = vmatprep.subr.bf16.mxu0 0
        %381 = vmatpush1.bf16.msra.mxu0 0
        %382 = vmatprep.subr.bf16.mxu0 0
        %383 = vmatpush1.bf16.msra.mxu0 0
        %384 = vmatprep.subr.bf16.mxu0 0
        %385 = vmatpush1.bf16.msra.mxu0 0
        %386 = vmatprep.subr.bf16.mxu0 0
        %387 = vmatpush1.bf16.msra.mxu0 0
        %388 = vmatprep.mubr.bf16.mxu0 0
        %389 = vmatmul.mubr.bf16.gmra.mrb[0].mxu0 %v350
        %v390 = vpop.f32.mrb[0].mxu0
        %v391 = vadd.f32 0.0, %v390
        %v392 = vpop.f32.mrb[0].mxu0
        %v393 = vpop.f32.mrb[0].mxu0
        %v394 = vpop.f32.mrb[0].mxu0
        %395 = vdwg.mxu0
        %v396 = vmul.f32 %v391, %v215
        %v397 = vcombine.high %v396, 0.0
        %v399 = vunpack.c.l.s4 1983009808
        %v400 = vunpack.c.0.s8 %v399
        %v401 = vlaneseq
        %v402 = vshrl.u32 %v401, 7
        %v403 = vsub.s32 %v400, %v402
        %v404 = vrot.slane %v396, %v403
        %v406 = vunpack.c.l.s4 1983009808
        %v407 = vunpack.c.0.s8 %v406
        %v408 = vlaneseq
        %v409 = vshrl.u32 %v408, 7
        %v410 = vsub.s32 %v407, %v409
        %v411 = vrot.slane %v397, %v410
        %v412 = vcombine.high %v404, 0.0
        %v414 = vunpack.c.l.s4 1934713408
        %v415 = vunpack.c.0.s8 %v414
        %v416 = vlaneseq
        %v417 = vshrl.u32 %v416, 7
        %v418 = vsub.s32 %v415, %v417
        %v419 = vrot.slane %v404, %v418
        %v421 = vunpack.c.l.s4 1934713408
        %v422 = vunpack.c.0.s8 %v421
        %v423 = vlaneseq
        %v424 = vshrl.u32 %v423, 7
        %v425 = vsub.s32 %v422, %v424
        %v426 = vrot.slane %v412, %v425
        %v427 = vcombine.high %v411, 0.0
        %v429 = vunpack.c.l.s4 1934713408
        %v430 = vunpack.c.0.s8 %v429
        %v431 = vlaneseq
        %v432 = vshrl.u32 %v431, 7
        %v433 = vsub.s32 %v430, %v432
        %v434 = vrot.slane %v411, %v433
        %v436 = vunpack.c.l.s4 1934713408
        %v437 = vunpack.c.0.s8 %v436
        %v438 = vlaneseq
        %v439 = vshrl.u32 %v438, 7
        %v440 = vsub.s32 %v437, %v439
        %v441 = vrot.slane %v427, %v440
        %v442 = vcombine.high %v419, 0.0
        %v443 = vcombine.high %v426, 0.0
        %v444 = vcombine.high %v434, 0.0
        %v445 = vcombine.high %v441, 0.0
        %447 = vrot.lane.b32.xlu0 %v442, 16
        %v448 = vpop.permute.xlu0 %447
        %451 = vrot.lane.b32.xlu0 %v426, 32
        %v452 = vpop.permute.xlu0 %451
        %455 = vrot.lane.b32.xlu0 %v443, 48
        %v456 = vpop.permute.xlu0 %455
        %459 = vrot.lane.b32.xlu0 %v434, 64
        %v460 = vpop.permute.xlu0 %459
        %463 = vrot.lane.b32.xlu0 %v444, 80
        %v464 = vpop.permute.xlu0 %463
        %467 = vrot.lane.b32.xlu0 %v441, 96
        %v468 = vpop.permute.xlu0 %467
        %471 = vrot.lane.b32.xlu0 %v445, 112
        %v472 = vpop.permute.xlu0 %471
        %v474 = vsel %vm277, %v419, %v448
        %v475 = vsel %vm228, %v474, %v452
        %vm476 = vcmask 392192
        %v477 = vsel %vm476, %v475, %v456
        %vm478 = vcmask 523264
        %v479 = vsel %vm478, %v477, %v460
        %vm480 = vcmask 654336
        %v481 = vsel %vm480, %v479, %v464
        %vm482 = vcmask 785408
        %v483 = vsel %vm482, %v481, %v468
        %vm484 = vcmask 916480
        %v485 = vsel %vm484, %v483, %v472
        %486 = vst [vmem:[%s199] sm:$0x1] %v485
        %s487 = sand.u32 %s97, 1
        %s488 = scalar_lea.sflag [#allocation4], %s487
        %s489 = sand.u32 %s97, 1
        %s490 = scalar_lea.vmem [#allocation7], %s489
        // Predicated region
        $region41: #{tpu_custom_call.1} parent=31 // pred_check
          %p491 = pneg %p107
        $region42: #{tpu_custom_call.1} parent=31 // pred_check_branch
          %493 = sbr.rel (%p491) target = $region44
        $region43: #{tpu_custom_call.1} parent=31 // pred_region
          %s495 = ssub.s32 16, 16
          %496 = vsyncadd %s488, %s495
          %s497 = smul.addr %s21, 16
          %s498 = scalar_lea.hbm %s3, %s497
          %s500 = sshll.u32 %s490, 4
          %s501 = int_to_ptr.vmem [resolvable:$true] %s500
          %503 = dma.vmem_to_hbm [thread:$0]  %s501, 16, %s498, %s488
        $region44: #{tpu_custom_call.1} parent=31 // pred_fallthru
          _
      $region32: #{tpu_custom_call.1} parent=5 // pred_fallthru
        _
      %p504 = scmp.le.s32.totalorder 2, %s16
      // Predicated region
      $region45: #{tpu_custom_call.1} parent=5 // pred_check
        %p505 = pneg %p504
      $region46: #{tpu_custom_call.1} parent=5 // pred_check_branch
        %507 = sbr.rel (%p505) target = $region48
      $region47: #{tpu_custom_call.1} parent=5 // pred_region
        %s508 = ssub.s32 %s16, 2
        // Predicated region
        $region49: #{tpu_custom_call.1} parent=47 // pred_check
          %p509 = pneg %p113
        $region50: #{tpu_custom_call.1} parent=47 // pred_check_branch
          %511 = sbr.rel (%p509) target = $region52
        $region51: #{tpu_custom_call.1} parent=47 // pred_region
          %s512 = sand.u32 %s98, 1
          %s513 = scalar_lea.sflag [#allocation4], %s512
          %s514 = sand.u32 %s98, 1
          %s515 = scalar_lea.vmem [#allocation7], %s514
          %516 = dma.done %s513, 16
        $region52: #{tpu_custom_call.1} parent=47 // pred_fallthru
          _
      $region48: #{tpu_custom_call.1} parent=5 // pred_fallthru
        _
    $region6: #{tpu_custom_call.1} parent=1 // loop_footer
      %s20 = sadd.s32 1, %s16
    $region7: #{tpu_custom_call.1} parent=1 // loop_footer_branch
      %15 = sbr.rel target = $region3
    $region8: #{tpu_custom_call.1} parent=1 // loop_exit
      _
    %517 = vsyncpa [#allocation3], 1
    %s518 = scalar_lea.sflag [#allocation3], 1
    %519 = vsyncpa %s518, 1
    %520 = vsyncpa [#allocation6], 1
    %521 = vsyncpa [#allocation4], 1
    %s522 = scalar_lea.sflag [#allocation4], 1
    %523 = vsyncpa %s522, 1

</llo_original>
